<compile_context>
chip_gen: v7x
topology: tpu7x:2x2x1
jax: 0.10.0
libtpu: 0.0.40
codegen_flags: <defaults>
</compile_context>

<pallas_src>
import functools

import jax
import jax.numpy as jnp
from jax import lax
from jax.experimental import pallas as pl
from jax.experimental.pallas import tpu as pltpu

# ----- small synthetic config (consistent with the module) -----
WORD_VOCAB = 32      # bert word_embeddings rows (after resize_token_embeddings)
EXTRA_VOCAB = 2      # nn.Embedding(2, D)
MAX_POS = 16
EMB = 128            # embedding_size == bert hidden size
HIDDEN = 128         # GRU hidden_size
NUM_LAYERS = 2
CONTEXT_AS_INPUT = True
SPLIT_LAYERS = True
LN_EPS = 1e-12       # BERT LayerNorm eps


def _round_up(x, m):
    return (x + m - 1) // m * m


def _gelu_tanh(x):
    # TODO(synk): PyTorch nn.functional.gelu defaults to exact erf-GELU; the tanh
    # approximation is used here (Mosaic-native tanh on the EUP).
    return 0.5 * x * (1.0 + jnp.tanh(0.7978845608028654 * (x + 0.044715 * x * x * x)))


def _sigmoid(x):
    return 1.0 / (1.0 + jnp.exp(-x))


# --------------------------------------------------------------------------
# Kernel 1: SplitEmbedding (fused tables, token-tile grid, in-kernel gather)
# --------------------------------------------------------------------------
def _embed_kernel(ids_ref, pos_ref,                     # scalar-prefetch (SMEM)
                  table_ref, postok_ref, gamma_ref, beta_ref,
                  out_ref, xbuf, *, tile_t):
    tile = pl.program_id(0)

    def gather_one(t, carry):
        g = tile * tile_t + t
        wid = ids_ref[g]                    # fused word/extra row id
        pid = pos_ref[g]                    # position id
        xbuf[pl.ds(t, 1), :] = (table_ref[pl.ds(wid, 1), :]
                                + postok_ref[pl.ds(pid, 1), :])
        return carry

    lax.fori_loop(0, tile_t, gather_one, 0)

    # Vectorized LayerNorm over the whole (tile_t, D) tile.
    x = xbuf[...]
    mean = jnp.mean(x, axis=-1, keepdims=True)
    c = x - mean
    var = jnp.mean(c * c, axis=-1, keepdims=True)
    xn = c * lax.rsqrt(var + LN_EPS)
    out_ref[...] = xn * gamma_ref[...] + beta_ref[...]
    # TODO(synk): embedding dropout (p=0.1) omitted -- identity in eval mode.


def split_embedding(input_ids, fused_table, postok_table, gamma, beta,
                    position_ids=None, past_key_values_length=0):
    B, S = input_ids.shape
    T = B * S
    D = fused_table.shape[1]

    ids = input_ids.reshape(T).astype(jnp.int32)
    if position_ids is None:
        pos = (jnp.arange(T, dtype=jnp.int32) % S) + jnp.int32(past_key_values_length)
    else:
        pos = position_ids.reshape(T).astype(jnp.int32)

    tile_t = min(256, _round_up(T, 8))
    t_pad = _round_up(T, tile_t)
    if t_pad != T:
        ids = jnp.pad(ids, (0, t_pad - T))
        pos = jnp.pad(pos, (0, t_pad - T))

    gamma2d = gamma.reshape(1, D)
    beta2d = beta.reshape(1, D)

    grid_spec = pltpu.PrefetchScalarGridSpec(
        num_scalar_prefetch=2,
        grid=(t_pad // tile_t,),
        in_specs=[
            # whole tables resident in VMEM (constant index map)
            pl.BlockSpec(fused_table.shape, lambda i, ids_r, pos_r: (0, 0)),
            pl.BlockSpec(postok_table.shape, lambda i, ids_r, pos_r: (0, 0)),
            pl.BlockSpec((1, D), lambda i, ids_r, pos_r: (0, 0)),
            pl.BlockSpec((1, D), lambda i, ids_r, pos_r: (0, 0)),
        ],
        out_specs=pl.BlockSpec((tile_t, D), lambda i, ids_r, pos_r: (i, 0)),
        scratch_shapes=[pltpu.VMEM((tile_t, D), jnp.float32)],
    )

    out = pl.pallas_call(
        functools.partial(_embed_kernel, tile_t=tile_t),
        out_shape=jax.ShapeDtypeStruct((t_pad, D), jnp.float32),
        grid_spec=grid_spec,
        compiler_params=pltpu.CompilerParams(
            dimension_semantics=("parallel",)),
    )(ids, pos, fused_table, postok_table, gamma2d, beta2d)

    return out[:T].reshape(B, S, D)


def embed_tokens(params, input_ids, position_ids=None, past_key_values_length=0):
    """SplitEmbedding forward with fused (word ++ extra) table and pre-added pos+tok0."""
    fused_table = jnp.concatenate([params["word_emb"], params["extra_emb"]], axis=0)
    postok = params["pos_emb"] + params["tok_emb"][0][None, :]
    return split_embedding(input_ids, fused_table, postok,
                           params["ln_emb_g"], params["ln_emb_b"],
                           position_ids=position_ids,
                           past_key_values_length=past_key_values_length)


# --------------------------------------------------------------------------
# Kernel 2: GRU cell (single decode step, one call per layer)
# --------------------------------------------------------------------------
def _gru_cell_kernel(x_ref, h_ref, wih_ref, whh_ref, bih_ref, bhh_ref, hout_ref):
    H = h_ref.shape[-1]
    x = x_ref[...]
    h = h_ref[...]
    gi = jnp.dot(x, wih_ref[...], preferred_element_type=jnp.float32) + bih_ref[...]
    gh = jnp.dot(h, whh_ref[...], preferred_element_type=jnp.float32) + bhh_ref[...]
    r = _sigmoid(gi[:, 0:H] + gh[:, 0:H])
    z = _sigmoid(gi[:, H:2 * H] + gh[:, H:2 * H])
    n = jnp.tanh(gi[:, 2 * H:3 * H] + r * gh[:, 2 * H:3 * H])
    hout_ref[...] = (1.0 - z) * n + z * h


def gru_cell(x, h, wih_t, whh_t, bih, bhh):
    B, H = h.shape
    return pl.pallas_call(
        _gru_cell_kernel,
        out_shape=jax.ShapeDtypeStruct((B, H), jnp.float32),
    )(x, h, wih_t, whh_t, bih.reshape(1, -1), bhh.reshape(1, -1))


# --------------------------------------------------------------------------
# Kernel 3: transform + GELU + cls.predictions.transform + fused output head
# --------------------------------------------------------------------------
def _head_kernel(rnn_ref, ctx_ref, emb_ref,
                 wt_o_ref, wt_c_ref, wt_e_ref, bt_ref,
                 wpt_ref, bpt_ref, lng_ref, lnb_ref,
                 wout_ref, bout_ref, out_ref):
    # transform(cat(output, context, embedded)) done as 3 partial matmuls
    t = (jnp.dot(rnn_ref[...], wt_o_ref[...], preferred_element_type=jnp.float32)
         + jnp.dot(ctx_ref[...], wt_c_ref[...], preferred_element_type=jnp.float32)
         + jnp.dot(emb_ref[...], wt_e_ref[...], preferred_element_type=jnp.float32)
         + bt_ref[...])
    t = _gelu_tanh(t)
    # BertPredictionHeadTransform: Linear + GELU + LayerNorm(eps=1e-12)
    p = _gelu_tanh(jnp.dot(t, wpt_ref[...], preferred_element_type=jnp.float32)
                   + bpt_ref[...])
    mean = jnp.mean(p, axis=-1, keepdims=True)
    c = p - mean
    var = jnp.mean(c * c, axis=-1, keepdims=True)
    p = c * lax.rsqrt(var + LN_EPS) * lng_ref[...] + lnb_ref[...]
    # decoder (vocab) and linear_extra (2) fused along output dim in the wrapper
    out_ref[...] = (jnp.dot(p, wout_ref[...], preferred_element_type=jnp.float32)
                    + bout_ref[...])


def prediction_head(rnn_out, ctx, emb, wt_o, wt_c, wt_e, bt,
                    wpt, bpt, lng, lnb, wout, bout):
    B = rnn_out.shape[0]
    V = wout.shape[1]
    return pl.pallas_call(
        _head_kernel,
        out_shape=jax.ShapeDtypeStruct((B, V), jnp.float32),
    )(rnn_out, ctx, emb, wt_o, wt_c, wt_e, bt.reshape(1, -1),
      wpt, bpt.reshape(1, -1), lng.reshape(1, -1), lnb.reshape(1, -1),
      wout, bout.reshape(1, -1))


# --------------------------------------------------------------------------
# RNNDecoder.forward
# --------------------------------------------------------------------------
def rnn_decoder(params, input_tok, hidden, context, position_ids=None):
    """input_tok: (B,) int32; hidden: (L, B, H); context: (1, B, D)."""
    input_ids = input_tok[:, None] if input_tok.ndim == 1 else input_tok   # (B, 1)

    emb = embed_tokens(params, input_ids, position_ids=position_ids)       # (B, 1, D)
    embedded = emb[:, 0, :]                                                # (B, D)
    ctx2d = context[0]                                                     # (B, D)

    # GRU: one time step, NUM_LAYERS layers (inter-layer dropout = identity in eval).
    x = jnp.concatenate([embedded, ctx2d], axis=-1) if CONTEXT_AS_INPUT else embedded
    new_hidden = []
    for l in range(NUM_LAYERS):
        h_new = gru_cell(x, hidden[l],
                         params[f"gru{l}_wih_t"], params[f"gru{l}_whh_t"],
                         params[f"gru{l}_bih"], params[f"gru{l}_bhh"])
        new_hidden.append(h_new)
        x = h_new
    rnn_out = x                                                            # (B, H)
    hidden_out = jnp.stack(new_hidden, axis=0)                             # (L, B, H)

    H = rnn_out.shape[-1]
    D = embedded.shape[-1]
    wt = params["wt"]                               # (H + 2D, H), input-major
    wt_o, wt_c, wt_e = wt[:H], wt[H:H + D], wt[H + D:]
    wout = jnp.concatenate([params["wdec"], params["wex"]], axis=1)        # (H, V+2)
    bout = jnp.concatenate([params["bdec"], params["bex"]], axis=0)        # (V+2,)

    prediction = prediction_head(rnn_out, ctx2d, embedded, wt_o, wt_c, wt_e,
                                 params["bt"], params["wpt"], params["bpt"],
                                 params["ln_pt_g"], params["ln_pt_b"], wout, bout)
    return prediction, hidden_out


# --------------------------------------------------------------------------
# Pure-JAX references
# --------------------------------------------------------------------------
def split_embedding_ref(params, input_ids, position_ids=None):
    B, S = input_ids.shape
    ids = input_ids.astype(jnp.int32)
    mask = ids >= WORD_VOCAB
    we = params["word_emb"][jnp.where(mask, 0, ids)]
    ee = params["extra_emb"][jnp.where(mask, ids - WORD_VOCAB, 0)]
    e = jnp.where(mask[..., None], ee, we)
    if position_ids is None:
        pos = params["pos_emb"][jnp.arange(S)][None, :, :]
    else:
        pos = params["pos_emb"][position_ids.reshape(B, S)]
    x = e + params["tok_emb"][0][None, None, :] + pos
    mean = x.mean(-1, keepdims=True)
    var = ((x - mean) ** 2).mean(-1, keepdims=True)
    return (x - mean) * lax.rsqrt(var + LN_EPS) * params["ln_emb_g"] + params["ln_emb_b"]


def rnn_decoder_ref(params, input_tok, hidden, context, position_ids=None):
    prec = jax.lax.Precision.HIGHEST
    input_ids = input_tok[:, None] if input_tok.ndim == 1 else input_tok
    emb = split_embedding_ref(params, input_ids, position_ids)
    embedded = emb[:, 0, :]
    ctx2d = context[0]
    xx = jnp.concatenate([embedded, ctx2d], -1) if CONTEXT_AS_INPUT else embedded
    new_hidden = []
    for l in range(NUM_LAYERS):
        h = hidden[l]
        H = h.shape[-1]
        gi = jnp.dot(xx, params[f"gru{l}_wih_t"], precision=prec) + params[f"gru{l}_bih"]
        gh = jnp.dot(h, params[f"gru{l}_whh_t"], precision=prec) + params[f"gru{l}_bhh"]
        r = _sigmoid(gi[:, :H] + gh[:, :H])
        z = _sigmoid(gi[:, H:2 * H] + gh[:, H:2 * H])
        n = jnp.tanh(gi[:, 2 * H:] + r * gh[:, 2 * H:])
        hn = (1.0 - z) * n + z * h
        new_hidden.append(hn)
        xx = hn
    rnn_out = xx
    dec_in = jnp.concatenate([rnn_out, ctx2d, embedded], axis=1)
    t = _gelu_tanh(jnp.dot(dec_in, params["wt"], precision=prec) + params["bt"])
    p = _gelu_tanh(jnp.dot(t, params["wpt"], precision=prec) + params["bpt"])
    mean = p.mean(-1, keepdims=True)
    var = ((p - mean) ** 2).mean(-1, keepdims=True)
    p = (p - mean) * lax.rsqrt(var + LN_EPS) * params["ln_pt_g"] + params["ln_pt_b"]
    main = jnp.dot(p, params["wdec"], precision=prec) + params["bdec"]
    extra = jnp.dot(p, params["wex"], precision=prec) + params["bex"]
    return jnp.concatenate([main, extra], -1), jnp.stack(new_hidden, 0)


# --------------------------------------------------------------------------
if __name__ == "__main__":
    key = jax.random.PRNGKey(0)
    ks = list(jax.random.split(key, 32))
    k = iter(ks)

    B = 8
    params = {
        "word_emb": 0.02 * jax.random.normal(next(k), (WORD_VOCAB, EMB), jnp.float32),
        "extra_emb": 0.02 * jax.random.normal(next(k), (EXTRA_VOCAB, EMB), jnp.float32),
        "pos_emb": 0.02 * jax.random.normal(next(k), (MAX_POS, EMB), jnp.float32),
        "tok_emb": 0.02 * jax.random.normal(next(k), (2, EMB), jnp.float32),
        "ln_emb_g": 1.0 + 0.01 * jax.random.normal(next(k), (EMB,), jnp.float32),
        "ln_emb_b": 0.01 * jax.random.normal(next(k), (EMB,), jnp.float32),
        "wt": 0.05 * jax.random.normal(next(k), (HIDDEN + 2 * EMB, HIDDEN), jnp.float32),
        "bt": 0.05 * jax.random.normal(next(k), (HIDDEN,), jnp.float32),
        "wpt": 0.05 * jax.random.normal(next(k), (HIDDEN, HIDDEN), jnp.float32),
        "bpt": 0.05 * jax.random.normal(next(k), (HIDDEN,), jnp.float32),
        "ln_pt_g": 1.0 + 0.01 * jax.random.normal(next(k), (HIDDEN,), jnp.float32),
        "ln_pt_b": 0.01 * jax.random.normal(next(k), (HIDDEN,), jnp.float32),
        "wdec": 0.05 * jax.random.normal(next(k), (HIDDEN, WORD_VOCAB), jnp.float32),
        "bdec": 0.05 * jax.random.normal(next(k), (WORD_VOCAB,), jnp.float32),
        "wex": 0.05 * jax.random.normal(next(k), (HIDDEN, 2), jnp.float32),
        "bex": jnp.zeros((2,), jnp.float32),      # matches nn.Parameter(torch.zeros(2))
    }
    for l in range(NUM_LAYERS):
        in_l = (2 * EMB if CONTEXT_AS_INPUT else EMB) if l == 0 else HIDDEN
        params[f"gru{l}_wih_t"] = 0.05 * jax.random.normal(next(k), (in_l, 3 * HIDDEN), jnp.float32)
        params[f"gru{l}_whh_t"] = 0.05 * jax.random.normal(next(k), (HIDDEN, 3 * HIDDEN), jnp.float32)
        params[f"gru{l}_bih"] = 0.05 * jax.random.normal(next(k), (3 * HIDDEN,), jnp.float32)
        params[f"gru{l}_bhh"] = 0.05 * jax.random.normal(next(k), (3 * HIDDEN,), jnp.float32)

    # inputs: token ids span both pretrained [0, 32) and extra [32, 34) vocab
    input_tok = jax.random.randint(next(k), (B,), 0, WORD_VOCAB + EXTRA_VOCAB, dtype=jnp.int32)
    hidden = 0.1 * jax.random.normal(next(k), (NUM_LAYERS, B, HIDDEN), jnp.float32)
    context = 0.1 * jax.random.normal(next(k), (1, B, EMB), jnp.float32)

    # 1) tight check of the embedding kernel (no matmuls involved)
    emb_k = jax.jit(embed_tokens)(params, input_tok[:, None])
    emb_k = jax.block_until_ready(emb_k)
    emb_r = split_embedding_ref(params, input_tok[:, None])
    assert emb_k.shape == (B, 1, EMB)
    assert jnp.allclose(emb_k, emb_r, rtol=1e-5, atol=1e-5), "embedding mismatch"

    # 2) full RNNDecoder forward
    fwd = jax.jit(rnn_decoder)
    pred, hid = fwd(params, input_tok, hidden, context)
    pred, hid = jax.block_until_ready((pred, hid))
    pred_r, hid_r = rnn_decoder_ref(params, input_tok, hidden, context)

    assert pred.shape == (B, WORD_VOCAB + 2)
    assert hid.shape == (NUM_LAYERS, B, HIDDEN)
    # looser tolerance: MXU matmul pass structure may differ from XLA's dot
    assert jnp.allclose(hid, hid_r, rtol=2e-2, atol=2e-2), "hidden mismatch vs reference"
    assert jnp.allclose(pred, pred_r, rtol=2e-2, atol=2e-2), "prediction mismatch vs reference"

    print("KERNEL_OK")
</pallas_src>

<mosaic_0001>
module attributes {stable_mosaic.version = 11 : i64} {
  func.func @_embed_kernel(%arg0: i32, %arg1: memref<8xi32, #tpu.memory_space<smem>>, %arg2: memref<8xi32, #tpu.memory_space<smem>>, %arg3: memref<34x128xf32, #tpu.memory_space<vmem>>, %arg4: memref<16x128xf32, #tpu.memory_space<vmem>>, %arg5: memref<1x128xf32, #tpu.memory_space<vmem>>, %arg6: memref<1x128xf32, #tpu.memory_space<vmem>>, %arg7: memref<8x128xf32, #tpu.memory_space<vmem>>, %arg8: memref<8x128xf32, #tpu.memory_space<vmem>>) attributes {dimension_semantics = [#tpu.dimension_semantics<parallel>], iteration_bounds = array<i64: 1>, scalar_prefetch = 2 : i64, scratch_operands = 1 : i64, tpu.core_type = #tpu.core_type<tc>, window_params = [{pipeline_mode = #tpu.pipeline_mode<synchronous>, transform_indices = @transform_0, window_bounds = array<i64: 34, 128>}, {pipeline_mode = #tpu.pipeline_mode<synchronous>, transform_indices = @transform_1, window_bounds = array<i64: 16, 128>}, {pipeline_mode = #tpu.pipeline_mode<synchronous>, transform_indices = @transform_2, window_bounds = array<i64: 1, 128>}, {pipeline_mode = #tpu.pipeline_mode<synchronous>, transform_indices = @transform_3, window_bounds = array<i64: 1, 128>}, {transform_indices = @transform_4, window_bounds = array<i64: 8, 128>}]} {
    %c0_i32 = arith.constant 0 : i32
    %c8_i32 = arith.constant 8 : i32
    %0 = arith.addi %c0_i32, %c8_i32 : i32
    %c1_i32 = arith.constant 1 : i32
    scf.for %arg9 = %c0_i32 to %0 step %c1_i32  : i32 {
      %c8_i32_12 = arith.constant 8 : i32
      %25 = arith.muli %arg0, %c8_i32_12 : i32
      %26 = arith.addi %25, %arg9 : i32
      %27 = arith.index_cast %26 : i32 to index
      %28 = memref.load %arg1[%27] : memref<8xi32, #tpu.memory_space<smem>>
      %29 = arith.index_cast %26 : i32 to index
      %30 = memref.load %arg2[%29] : memref<8xi32, #tpu.memory_space<smem>>
      %31 = arith.index_cast %28 : i32 to index
      %c0_13 = arith.constant 0 : index
      %32 = vector.load %arg3[%31, %c0_13] : memref<34x128xf32, #tpu.memory_space<vmem>>, vector<1x128xf32>
      %33 = arith.index_cast %30 : i32 to index
      %c0_14 = arith.constant 0 : index
      %34 = vector.load %arg4[%33, %c0_14] : memref<16x128xf32, #tpu.memory_space<vmem>>, vector<1x128xf32>
      %35 = arith.addf %32, %34 : vector<1x128xf32>
      %36 = arith.index_cast %arg9 : i32 to index
      %c0_15 = arith.constant 0 : index
      %37 = vector.load %arg8[%36, %c0_15] : memref<8x128xf32, #tpu.memory_space<vmem>>, vector<1x128xf32>
      tpu.vector_store %arg8[%36, %c0_15], %35 {strides = array<i32>} : memref<8x128xf32, #tpu.memory_space<vmem>>, vector<1x128xf32>,
    }
    %c8_i32_0 = arith.constant 8 : i32
    %c0 = arith.constant 0 : index
    %c0_1 = arith.constant 0 : index
    %1 = vector.load %arg8[%c0, %c0_1] : memref<8x128xf32, #tpu.memory_space<vmem>>, vector<8x128xf32>
    %cst = arith.constant dense<0.000000e+00> : vector<8xf32>
    %2 = vector.multi_reduction <add>, %1, %cst [1] : vector<8x128xf32> to vector<8xf32>
    %3 = vector.shape_cast %2 : vector<8xf32> to vector<8x1xf32>
    %cst_2 = arith.constant 1.280000e+02 : f32
    %4 = vector.broadcast %cst_2 : f32 to vector<8x1xf32>
    %5 = arith.divf %3, %4 : vector<8x1xf32>
    %6 = vector.broadcast %5 : vector<8x1xf32> to vector<8x128xf32>
    %7 = arith.subf %1, %6 : vector<8x128xf32>
    %8 = arith.mulf %7, %7 : vector<8x128xf32>
    %cst_3 = arith.constant dense<0.000000e+00> : vector<8xf32>
    %9 = vector.multi_reduction <add>, %8, %cst_3 [1] : vector<8x128xf32> to vector<8xf32>
    %10 = vector.shape_cast %9 : vector<8xf32> to vector<8x1xf32>
    %cst_4 = arith.constant 1.280000e+02 : f32
    %11 = vector.broadcast %cst_4 : f32 to vector<8x1xf32>
    %12 = arith.divf %10, %11 : vector<8x1xf32>
    %cst_5 = arith.constant 9.99999996E-13 : f32
    %13 = vector.broadcast %cst_5 : f32 to vector<8x1xf32>
    %14 = arith.addf %12, %13 : vector<8x1xf32>
    %15 = math.rsqrt %14 : vector<8x1xf32>
    %16 = vector.broadcast %15 : vector<8x1xf32> to vector<8x128xf32>
    %17 = arith.mulf %7, %16 : vector<8x128xf32>
    %c0_6 = arith.constant 0 : index
    %c0_7 = arith.constant 0 : index
    %18 = vector.load %arg5[%c0_6, %c0_7] : memref<1x128xf32, #tpu.memory_space<vmem>>, vector<1x128xf32>
    %19 = vector.broadcast %18 : vector<1x128xf32> to vector<8x128xf32>
    %20 = arith.mulf %17, %19 : vector<8x128xf32>
    %c0_8 = arith.constant 0 : index
    %c0_9 = arith.constant 0 : index
    %21 = vector.load %arg6[%c0_8, %c0_9] : memref<1x128xf32, #tpu.memory_space<vmem>>, vector<1x128xf32>
    %22 = vector.broadcast %21 : vector<1x128xf32> to vector<8x128xf32>
    %23 = arith.addf %20, %22 : vector<8x128xf32>
    %c0_10 = arith.constant 0 : index
    %c0_11 = arith.constant 0 : index
    %24 = vector.load %arg7[%c0_10, %c0_11] : memref<8x128xf32, #tpu.memory_space<vmem>>, vector<8x128xf32>
    tpu.vector_store %arg7[%c0_10, %c0_11], %23 {strides = array<i32>} : memref<8x128xf32, #tpu.memory_space<vmem>>, vector<8x128xf32>,
    return
  }
  func.func @transform_0(%arg0: i32, %arg1: memref<8xi32, #tpu.memory_space<smem>>, %arg2: memref<8xi32, #tpu.memory_space<smem>>) -> (i32, i32) {
    %c0_i32 = arith.constant 0 : i32
    %c0_i32_0 = arith.constant 0 : i32
    %c0_i32_1 = arith.constant 0 : i32
    return %c0_i32, %c0_i32_0 : i32, i32
  }
  func.func @transform_1(%arg0: i32, %arg1: memref<8xi32, #tpu.memory_space<smem>>, %arg2: memref<8xi32, #tpu.memory_space<smem>>) -> (i32, i32) {
    %c0_i32 = arith.constant 0 : i32
    %c0_i32_0 = arith.constant 0 : i32
    %c0_i32_1 = arith.constant 0 : i32
    return %c0_i32, %c0_i32_0 : i32, i32
  }
  func.func @transform_2(%arg0: i32, %arg1: memref<8xi32, #tpu.memory_space<smem>>, %arg2: memref<8xi32, #tpu.memory_space<smem>>) -> (i32, i32) {
    %c0_i32 = arith.constant 0 : i32
    %c0_i32_0 = arith.constant 0 : i32
    %c0_i32_1 = arith.constant 0 : i32
    return %c0_i32, %c0_i32_0 : i32, i32
  }
  func.func @transform_3(%arg0: i32, %arg1: memref<8xi32, #tpu.memory_space<smem>>, %arg2: memref<8xi32, #tpu.memory_space<smem>>) -> (i32, i32) {
    %c0_i32 = arith.constant 0 : i32
    %c0_i32_0 = arith.constant 0 : i32
    %c0_i32_1 = arith.constant 0 : i32
    return %c0_i32, %c0_i32_0 : i32, i32
  }
  func.func @transform_4(%arg0: i32, %arg1: memref<8xi32, #tpu.memory_space<smem>>, %arg2: memref<8xi32, #tpu.memory_space<smem>>) -> (i32, i32) {
    %c0_i32 = arith.constant 0 : i32
    %c0_i32_0 = arith.constant 0 : i32
    return %arg0, %c0_i32 : i32, i32
  }
}

</mosaic_0001>

<llo_original>
// kernel: embed_tokens.1
$region0: #{embed_tokens.1}
  #allocation0 [shape = 'u32[]', space=smem, size = 0x4, offset = 0x4, fixed_abs, tag = 'smem constant byte address 0x4 - core index']
  #allocation1 [shape = 'u32[144,128]{1,0:T(1,128)}', space=vmem, size = 0x12000, scoped, tag = 'internal scratch']
  #allocation2 [shape = 'f32[8,128]{1,0:T(8,128)}', space=vmem, size = 0x1000, scoped, tag = 'scratch operand']
  #allocation3 [shape = 's32[1]{0}', space=sflag, size = 0x4, scoped, tag = 'scoped memory for embed_tokens.1']
  #allocation4 [shape = 'u8[512]{0}', space=smem, size = 0x200, scoped, tag = 'prefetched SMEM operand 0']
  #allocation5 [shape = 'u8[512]{0}', space=smem, size = 0x200, scoped, tag = 'prefetched SMEM operand 1']
  %s0 = inlined_call_operand.vmem [shape: s32[8], index: 0, kind: input, shape index: {}]
  %s1 = inlined_call_operand.vmem [shape: s32[8], index: 1, kind: input, shape index: {}]
  %s2 = inlined_call_operand.vmem [shape: f32[34,128], index: 2, kind: input, shape index: {}]
  %s3 = inlined_call_operand.vmem [shape: f32[16,128], index: 3, kind: input, shape index: {}]
  %s4 = inlined_call_operand.vmem [shape: f32[1,128], index: 4, kind: input, shape index: {}]
  %s5 = inlined_call_operand.vmem [shape: f32[1,128], index: 5, kind: input, shape index: {}]
  %s6 = inlined_call_operand.hbm [shape: f32[8,128], index: 6, kind: output, shape index: {}]
  %s7 = sld [smem:[#allocation0]]
  $region33: #{embed_tokens.1} parent=0
    _
  %s9 = ssub.s32 1, %s7
  %s10 = scalar_select 0, %s9, %s7
  %s11 = sshll.u32 %s0, 4
  %s12 = int_to_ptr.vmem [resolvable:$true] %s11
  %14 = dma.vmem_to_smem %s12, 16, [#allocation4], [#allocation3]
  %s15 = sshll.u32 %s1, 4
  %s16 = int_to_ptr.vmem [resolvable:$true] %s15
  %18 = dma.vmem_to_smem %s16, 16, [#allocation5], [#allocation3]
  %19 = dma.done [#allocation3], 32
  %20 = sfence
  $region1: #{embed_tokens.1} parent=0
    #allocation6 [shape = 'u8[4096]{0}', space=vmem, size = 0x1000, scoped, tag = 'output window, operand 0, single buffered']
    #allocation7 [shape = 's32[1]{0}', space=sflag, size = 0x4, scoped, tag = 'scoped memory for embed_tokens.1']
    %21 = vsyncpa [#allocation7], 0
    // Predicated region
    $region2: #{embed_tokens.1} parent=1 // pred_check
      _
    $region3: #{embed_tokens.1} parent=1 // pred_check_branch
      %23 = sbr.rel (0) target = $region5
    $region4: #{embed_tokens.1} parent=1 // pred_region
      _
    $region5: #{embed_tokens.1} parent=1 // pred_fallthru
      _
    // Predicated region
    $region6: #{embed_tokens.1} parent=1 // pred_check
      _
    $region7: #{embed_tokens.1} parent=1 // pred_check_branch
      %25 = sbr.rel (0) target = $region9
    $region8: #{embed_tokens.1} parent=1 // pred_region
      _
    $region9: #{embed_tokens.1} parent=1 // pred_fallthru
      _
    // Predicated region
    $region10: #{embed_tokens.1} parent=1 // pred_check
      _
    $region11: #{embed_tokens.1} parent=1 // pred_check_branch
      %27 = sbr.rel (0) target = $region13
    $region12: #{embed_tokens.1} parent=1 // pred_region
      _
    $region13: #{embed_tokens.1} parent=1 // pred_fallthru
      _
    // Predicated region
    $region14: #{embed_tokens.1} parent=1 // pred_check
      _
    $region15: #{embed_tokens.1} parent=1 // pred_check_branch
      %29 = sbr.rel (0) target = $region17
    $region16: #{embed_tokens.1} parent=1 // pred_region
      _
    $region17: #{embed_tokens.1} parent=1 // pred_fallthru
      _
    loop: start=0, step=1, limit=8
    $region18: #{embed_tokens.1} parent=1 // loop_pre_header
      _
    $region19: #{embed_tokens.1} parent=1 // loop_header
      %s31 = sphi 0, %s35
      %p32 = scmp.ge.s32.totalorder %s31, 8
    $region20: #{embed_tokens.1} parent=1 // loop_header_branch
      %34 = sbr.rel (%p32) target = $region24
    $region21: #{embed_tokens.1} parent=1 // loop_body
      %s36 = smul.u32 0, 8
      %s37 = sadd.s32 %s36, %s31
      %s38 = sld [smem:[#allocation4 + %s37]]
      %s39 = sld [smem:[#allocation5 + %s37]]
      %s40 = scalar_lea.vmem %s2, %s38
      %v41 = vld [vmem:[%s40] sm:$0x1]
      %s42 = scalar_lea.vmem %s3, %s39
      %v43 = vld [vmem:[%s42] sm:$0x1]
      %v44 = vadd.f32 %v41, %v43
      %s45 = scalar_lea.vmem [#allocation2], %s31
      %46 = vst [vmem:[%s45] sm:$0x1] %v44
    $region22: #{embed_tokens.1} parent=1 // loop_footer
      %s35 = sadd.s32 1, %s31
    $region23: #{embed_tokens.1} parent=1 // loop_footer_branch
      %30 = sbr.rel target = $region19
    $region24: #{embed_tokens.1} parent=1 // loop_exit
      _
    %v47 = vld [vmem:[#allocation2] sm:$0xff]
    %48 = vadd.xlane.f32.xlu0 %v47
    %v49 = vpop.xlane.xlu0 %48
    %v50 = vrcp.pop 128.0
    %v51 = vmul.f32 %v49, %v50
    %v52 = vsub.f32 %v47, %v51
    %v53 = vmul.f32 %v52, %v52
    %54 = vadd.xlane.f32.xlu0 %v53
    %v55 = vpop.xlane.xlu0 %54
    %v56 = vmul.f32 %v55, %v50
    %v57 = vadd.f32 %v56, 1e-12
    %v58 = vrsqrt.pop %v57
    %v59 = vmul.f32 %v52, %v58
    %v60 = vld [vmem:[%s4] sm:$0x1]
    %v62 = vlaneseq
    %v63 = vshrl.u32 %v62, 7
    %v64 = vsub.s32 0, %v63
    %v65 = vrot.slane %v60, %v64
    %v67 = vmul.f32 %v59, %v65
    %v68 = vld [vmem:[%s5] sm:$0x1]
    %v70 = vlaneseq
    %v71 = vshrl.u32 %v70, 7
    %v72 = vsub.s32 0, %v71
    %v73 = vrot.slane %v68, %v72
    %v75 = vadd.f32 %v67, %v73
    %76 = vst [vmem:[#allocation6] sm:$0xff] %v75
    // Predicated region
    $region25: #{embed_tokens.1} parent=1 // pred_check
      _
    $region26: #{embed_tokens.1} parent=1 // pred_check_branch
      %78 = sbr.rel (0) target = $region28
    $region27: #{embed_tokens.1} parent=1 // pred_region
      %s80 = ssub.s32 128, 128
      %81 = vsyncadd [#allocation7], %s80
      %s83 = sshll.u32 [#allocation6], 4
      %s84 = int_to_ptr.vmem [resolvable:$true] %s83
      %86 = dma.vmem_to_hbm [thread:$0]  %s84, 128, %s6, [#allocation7]
    $region28: #{embed_tokens.1} parent=1 // pred_fallthru
      _
    // Predicated region
    $region29: #{embed_tokens.1} parent=1 // pred_check
      _
    $region30: #{embed_tokens.1} parent=1 // pred_check_branch
      %88 = sbr.rel (0) target = $region32
    $region31: #{embed_tokens.1} parent=1 // pred_region
      %89 = dma.done [#allocation7], 128
    $region32: #{embed_tokens.1} parent=1 // pred_fallthru
      _
    %90 = vsyncpa [#allocation7], 1

</llo_original>
